<compile_context>
chip_gen: v6e
topology: v6e:2x2x1
jax: 0.10.0
libtpu: 0.0.40
codegen_flags: <defaults>
</compile_context>

<pallas_src>
import functools

import jax
import jax.numpy as jnp
from jax.experimental import pallas as pl
from jax.experimental.pallas import tpu as pltpu


def focal_loss_kernel(logits_ref, target_ref, loss_ref, *, gamma):
    """Per-row focal loss for one (TILE_N, C) tile."""
    logits = logits_ref[...].astype(jnp.float32)   # (TILE_N, C); bf16 input OK
    tgt = target_ref[...]                          # (TILE_N, 1) int32
    tn, c = logits.shape

    # Stable row-wise softmax pieces (no full (TILE_N, C) log_softmax is
    # materialized -- only the row reductions are kept live).
    row_max = jnp.max(logits, axis=-1, keepdims=True)          # (TILE_N, 1)
    exp_shifted = jnp.exp(logits - row_max)                    # (TILE_N, C)
    sum_all = jnp.sum(exp_shifted, axis=-1, keepdims=True)     # (TILE_N, 1)

    # Gather the target logit with a one-hot compare.
    # NOTE: out-of-range targets give an all-False mask (target_logit = 0 and a
    # finite loss) instead of raising like torch's gather would.
    col_ids = jax.lax.broadcasted_iota(jnp.int32, (tn, c), 1)
    is_target = col_ids == tgt                                  # (TILE_N, C)
    target_logit = jnp.sum(jnp.where(is_target, logits, 0.0),
                           axis=-1, keepdims=True)              # (TILE_N, 1)

    # Per-row cross entropy: -log_softmax[target].
    ce = (row_max - target_logit) + jnp.log(sum_all)            # (TILE_N, 1), >= 0

    g = float(gamma)
    if g == 0.0:
        # (1 - p)**0 == 1 (matches torch: 0**0 == 1) -> plain mean CE.
        loss = ce
    else:
        # 1 - p computed as the softmax mass on the NON-target classes:
        # no catastrophic cancellation when p -> 1 (easy, high-confidence rows).
        sum_others = jnp.sum(jnp.where(is_target, 0.0, exp_shifted),
                             axis=-1, keepdims=True)            # (TILE_N, 1)
        one_minus_p = sum_others / sum_all
        if g.is_integer() and 1 <= int(g) <= 4:
            # Integer gamma: repeated multiply keeps the EUP free (jnp.power
            # with a float exponent lowers to exp(g * log(x))).
            w = one_minus_p
            for _ in range(int(g) - 1):
                w = w * one_minus_p
        else:
            w = jnp.power(one_minus_p, jnp.float32(g))
        loss = w * ce

    loss_ref[...] = loss


def focal_loss(logits, target, gamma=0.0, eps=1e-7, tile_bytes=2 << 20):
    """Mean focal loss over (N, C) logits and (N,) integer class targets."""
    del eps  # unused in the reference forward pass; kept for signature parity
    n, c = logits.shape
    target2d = target.astype(jnp.int32).reshape(n, 1)

    # Rows per tile so one f32-equivalent logits tile is ~tile_bytes (2 MiB
    # default).  With double-buffering plus the f32 body intermediates this
    # stays well inside a 32 MiB scoped-VMEM budget on v5e / v6e / v7x.
    tile_n = max(8, (tile_bytes // (c * 4)) // 8 * 8)
    tile_n = min(tile_n, max(8, (n // 8) * 8))
    grid = (pl.cdiv(n, tile_n),)

    per_row = pl.pallas_call(
        functools.partial(focal_loss_kernel, gamma=float(gamma)),
        out_shape=jax.ShapeDtypeStruct((n, 1), jnp.float32),
        grid=grid,
        in_specs=[
            pl.BlockSpec((tile_n, c), lambda i: (i, 0)),   # logits tile
            pl.BlockSpec((tile_n, 1), lambda i: (i, 0)),   # target tile
        ],
        out_specs=pl.BlockSpec((tile_n, 1), lambda i: (i, 0)),
        compiler_params=pltpu.CompilerParams(
            dimension_semantics=("parallel",),
            vmem_limit_bytes=32 << 20,
        ),
    )(logits, target2d)

    # Rows of the last (partial) tile that fall past N are masked on writeback
    # by Pallas, so `per_row` holds exactly the N valid per-row losses; the
    # divide-by-N happens once here rather than per tile.
    return jnp.sum(per_row) / jnp.float32(n)


def focal_loss_ref(logits, target, gamma=0.0):
    # Pure-JAX reference (mirrors torch.nn.CrossEntropyLoss(reduction='none')).
    logits = logits.astype(jnp.float32)
    logsm = jax.nn.log_softmax(logits, axis=-1)
    logp = -jnp.take_along_axis(logsm, target[:, None].astype(jnp.int32), axis=-1)[:, 0]
    p = jnp.exp(-logp)
    return jnp.mean((1.0 - p) ** gamma * logp)


if __name__ == "__main__":
    key = jax.random.PRNGKey(0)
    k1, k2 = jax.random.split(key)

    N, C = 24, 32
    logits = jax.random.normal(k1, (N, C), dtype=jnp.float32)
    target = jax.random.randint(k2, (N,), 0, C, dtype=jnp.int32)

    # Small tile_bytes forces several grid steps even at toy size so the tiled
    # / pipelined path (and remainder masking) is actually exercised.
    small_tile = 8 * C * 4

    for gamma in (0.0, 2.0, 1.5):
        out = jax.block_until_ready(
            focal_loss(logits, target, gamma=gamma, tile_bytes=small_tile))
        ref = jax.block_until_ready(focal_loss_ref(logits, target, gamma=gamma))
        assert jnp.allclose(out, ref, rtol=1e-5, atol=1e-5), (gamma, out, ref)

    # Non-divisible N: last tile is partially out of bounds -> masked writeback.
    n2 = 20
    out = jax.block_until_ready(
        focal_loss(logits[:n2], target[:n2], gamma=2.0, tile_bytes=small_tile))
    ref = jax.block_until_ready(focal_loss_ref(logits[:n2], target[:n2], gamma=2.0))
    assert jnp.allclose(out, ref, rtol=1e-5, atol=1e-5), (out, ref)

    # bf16 logits pass straight through (halves HBM bytes); compute stays f32.
    lbf = logits.astype(jnp.bfloat16)
    out = jax.block_until_ready(
        focal_loss(lbf, target, gamma=2.0, tile_bytes=small_tile))
    ref = jax.block_until_ready(focal_loss_ref(lbf, target, gamma=2.0))
    assert jnp.allclose(out, ref, rtol=1e-5, atol=1e-5), (out, ref)

    # Default (large) tile path: single block covering all rows.
    out = jax.block_until_ready(focal_loss(logits, target, gamma=2.0))
    ref = jax.block_until_ready(focal_loss_ref(logits, target, gamma=2.0))
    assert jnp.allclose(out, ref, rtol=1e-5, atol=1e-5), (out, ref)

    print("KERNEL_OK")
</pallas_src>

<mosaic_0001>
module attributes {stable_mosaic.version = 11 : i64} {
  func.func @focal_loss_kernel(%arg0: i32, %arg1: memref<8x32xf32, #tpu.memory_space<vmem>>, %arg2: memref<8x1xi32, #tpu.memory_space<vmem>>, %arg3: memref<8x1xf32, #tpu.memory_space<vmem>>) attributes {dimension_semantics = [#tpu.dimension_semantics<parallel>], iteration_bounds = array<i64: 3>, scalar_prefetch = 0 : i64, scratch_operands = 0 : i64, tpu.core_type = #tpu.core_type<tc>, window_params = [{transform_indices = @transform_0, window_bounds = array<i64: 8, 32>}, {transform_indices = @transform_1, window_bounds = array<i64: 8, 1>}, {transform_indices = @transform_2, window_bounds = array<i64: 8, 1>}]} {
    %c0 = arith.constant 0 : index
    %c0_0 = arith.constant 0 : index
    %0 = vector.load %arg1[%c0, %c0_0] : memref<8x32xf32, #tpu.memory_space<vmem>>, vector<8x32xf32>
    %c0_1 = arith.constant 0 : index
    %c0_2 = arith.constant 0 : index
    %1 = vector.load %arg2[%c0_1, %c0_2] : memref<8x1xi32, #tpu.memory_space<vmem>>, vector<8x1xi32>
    %cst = arith.constant dense<0xFF800000> : vector<8xf32>
    %2 = vector.multi_reduction <maximumf>, %0, %cst [1] : vector<8x32xf32> to vector<8xf32>
    %3 = vector.shape_cast %2 : vector<8xf32> to vector<8x1xf32>
    %4 = vector.broadcast %3 : vector<8x1xf32> to vector<8x32xf32>
    %5 = arith.subf %0, %4 : vector<8x32xf32>
    %6 = math.exp %5 : vector<8x32xf32>
    %cst_3 = arith.constant dense<0.000000e+00> : vector<8xf32>
    %7 = vector.multi_reduction <add>, %6, %cst_3 [1] : vector<8x32xf32> to vector<8xf32>
    %8 = vector.shape_cast %7 : vector<8xf32> to vector<8x1xf32>
    %9 = tpu.iota {dimensions = array<i32: 1>} : vector<8x32xi32>
    %10 = vector.broadcast %1 : vector<8x1xi32> to vector<8x32xi32>
    %11 = arith.cmpi eq, %9, %10 : vector<8x32xi32>
    %cst_4 = arith.constant 0.000000e+00 : f32
    %12 = vector.broadcast %cst_4 : f32 to vector<8x32xf32>
    %13 = arith.select %11, %0, %12 : vector<8x32xi1>, vector<8x32xf32>
    %cst_5 = arith.constant dense<0.000000e+00> : vector<8xf32>
    %14 = vector.multi_reduction <add>, %13, %cst_5 [1] : vector<8x32xf32> to vector<8xf32>
    %15 = vector.shape_cast %14 : vector<8xf32> to vector<8x1xf32>
    %16 = arith.subf %3, %15 : vector<8x1xf32>
    %17 = math.log %8 : vector<8x1xf32>
    %18 = arith.addf %16, %17 : vector<8x1xf32>
    %c0_6 = arith.constant 0 : index
    %c0_7 = arith.constant 0 : index
    %19 = vector.load %arg3[%c0_6, %c0_7] : memref<8x1xf32, #tpu.memory_space<vmem>>, vector<8x1xf32>
    tpu.vector_store %arg3[%c0_6, %c0_7], %18 {strides = array<i32>} : memref<8x1xf32, #tpu.memory_space<vmem>>, vector<8x1xf32>,
    return
  }
  func.func @transform_0(%arg0: i32) -> (i32, i32) {
    %c0_i32 = arith.constant 0 : i32
    %c0_i32_0 = arith.constant 0 : i32
    return %arg0, %c0_i32 : i32, i32
  }
  func.func @transform_1(%arg0: i32) -> (i32, i32) {
    %c0_i32 = arith.constant 0 : i32
    %c0_i32_0 = arith.constant 0 : i32
    return %arg0, %c0_i32 : i32, i32
  }
  func.func @transform_2(%arg0: i32) -> (i32, i32) {
    %c0_i32 = arith.constant 0 : i32
    %c0_i32_0 = arith.constant 0 : i32
    return %arg0, %c0_i32 : i32, i32
  }
}

</mosaic_0001>

<llo_original>
// kernel: tpu_custom_call.1
$region0: #{tpu_custom_call.1}
  #allocation0 [shape = 'u32[]', space=smem, size = 0x4, offset = 0x4, fixed_abs, tag = 'smem constant byte address 0x4 - core index']
  #allocation1 [shape = 'u32[144,128]{1,0:T(1,128)}', space=vmem, size = 0x12000, scoped, tag = 'internal scratch']
  %s0 = inlined_call_operand.vmem [shape: f32[24,32], index: 0, kind: input, shape index: {}]
  %s1 = inlined_call_operand.vmem [shape: s32[24,1], index: 1, kind: input, shape index: {}]
  %s2 = inlined_call_operand.vmem [shape: f32[24,1], index: 2, kind: output, shape index: {}]
  %s3 = sld [smem:[#allocation0]]
  $region41: #{tpu_custom_call.1} parent=0
    _
  %s5 = ssub.s32 1, %s3
  %s6 = scalar_select 0, %s5, %s3
  loop: start=0, step=1, limit=5
  $region2: #{tpu_custom_call.1} parent=0 // loop_pre_header
    _
  $region3: #{tpu_custom_call.1} parent=0 // loop_header
    %s8 = sphi 0, %s12
    %p9 = scmp.ge.s32.totalorder %s8, 5
    %s18 = sphi 0, %s20
    %s21 = sphi 0, %s18
    %s22 = sphi 0, %s21
    %s38 = sphi 0, %s22
    %s44 = sphi 0, %s46
    %s47 = sphi 0, %s44
    %s48 = sphi 0, %s47
    %s64 = sphi 0, %s48
    %s70 = sphi 0, %s72
    %s73 = sphi 0, %s70
    %s74 = sphi 0, %s73
    %s90 = sphi 0, %s74
  $region4: #{tpu_custom_call.1} parent=0 // loop_header_branch
    %11 = sbr.rel (%p9) target = $region8
  $region5: #{tpu_custom_call.1} parent=0 // loop_body
    %s13 = ssub.s32 %s8, 1
    %s14 = ssub.s32 %s8, 2
    %s15 = sadd.s32 %s8, 1
    %s16 = ssub.s32 %s8, %s15
    %p17 = scmp.eq.s32.totalorder %s16, 0
    %s19 = sadd.s32 %s18, 1
    %s20 = scalar_select %p17, %s18, %s19
    %p23 = pneg %p17
    %p24 = scmp.eq.s32.totalorder %s8, 2
    %p25 = por %p23, %p24
    %p26 = scmp.ne.s32.totalorder %s18, %s21
    %p27 = scmp.eq.s32.totalorder %s8, 0
    %p28 = por %p26, %p27
    %p29 = scmp.ne.s32.totalorder %s18, %s21
    %p30 = scmp.eq.s32.totalorder %s13, 2
    %p31 = por %p29, %p30
    %p32 = scmp.ne.s32.totalorder %s21, %s22
    %p33 = scmp.eq.s32.totalorder %s13, 0
    %p34 = por %p32, %p33
    %p35 = scmp.ne.s32.totalorder %s21, %s22
    %p36 = scmp.eq.s32.totalorder %s14, 2
    %p37 = por %p35, %p36
    %p39 = scmp.ne.s32.totalorder %s22, %s38
    %p40 = scmp.eq.s32.totalorder %s14, 0
    %p41 = por %p39, %p40
    %s42 = ssub.s32 %s8, %s15
    %p43 = scmp.eq.s32.totalorder %s42, 0
    %s45 = sadd.s32 %s44, 1
    %s46 = scalar_select %p43, %s44, %s45
    %p49 = pneg %p43
    %p50 = scmp.eq.s32.totalorder %s8, 2
    %p51 = por %p49, %p50
    %p52 = scmp.ne.s32.totalorder %s44, %s47
    %p53 = scmp.eq.s32.totalorder %s8, 0
    %p54 = por %p52, %p53
    %p55 = scmp.ne.s32.totalorder %s44, %s47
    %p56 = scmp.eq.s32.totalorder %s13, 2
    %p57 = por %p55, %p56
    %p58 = scmp.ne.s32.totalorder %s47, %s48
    %p59 = scmp.eq.s32.totalorder %s13, 0
    %p60 = por %p58, %p59
    %p61 = scmp.ne.s32.totalorder %s47, %s48
    %p62 = scmp.eq.s32.totalorder %s14, 2
    %p63 = por %p61, %p62
    %p65 = scmp.ne.s32.totalorder %s48, %s64
    %p66 = scmp.eq.s32.totalorder %s14, 0
    %p67 = por %p65, %p66
    %s68 = ssub.s32 %s8, %s15
    %p69 = scmp.eq.s32.totalorder %s68, 0
    %s71 = sadd.s32 %s70, 1
    %s72 = scalar_select %p69, %s70, %s71
    %p75 = pneg %p69
    %p76 = scmp.eq.s32.totalorder %s8, 2
    %p77 = por %p75, %p76
    %p78 = scmp.ne.s32.totalorder %s70, %s73
    %p79 = scmp.eq.s32.totalorder %s8, 0
    %p80 = por %p78, %p79
    %p81 = scmp.ne.s32.totalorder %s70, %s73
    %p82 = scmp.eq.s32.totalorder %s13, 2
    %p83 = por %p81, %p82
    %p84 = scmp.ne.s32.totalorder %s73, %s74
    %p85 = scmp.eq.s32.totalorder %s13, 0
    %p86 = por %p84, %p85
    %p87 = scmp.ne.s32.totalorder %s73, %s74
    %p88 = scmp.eq.s32.totalorder %s14, 2
    %p89 = por %p87, %p88
    %p91 = scmp.ne.s32.totalorder %s74, %s90
    %p92 = scmp.eq.s32.totalorder %s14, 0
    %p93 = por %p91, %p92
    %p94 = scmp.le.s32.totalorder 1, %s8
    %p95 = scmp.lt.s32.totalorder %s8, 4
    %p96 = pnand %p94, %p95
    %p97 = pneg %p96
    // Predicated region
    $region9: #{tpu_custom_call.1} parent=5 // pred_check
      _
    $region10: #{tpu_custom_call.1} parent=5 // pred_check_branch
      %99 = sbr.rel (%p96) target = $region12
    $region11: #{tpu_custom_call.1} parent=5 // pred_region
      %s100 = ssub.s32 %s8, 1
    $region12: #{tpu_custom_call.1} parent=5 // pred_fallthru
      _
    %p101 = scmp.lt.s32.totalorder %s8, 3
    // Predicated region
    $region13: #{tpu_custom_call.1} parent=5 // pred_check
      %p102 = pneg %p101
    $region14: #{tpu_custom_call.1} parent=5 // pred_check_branch
      %104 = sbr.rel (%p102) target = $region16
    $region15: #{tpu_custom_call.1} parent=5 // pred_region
      // Predicated region
      $region17: #{tpu_custom_call.1} parent=15 // pred_check
        %p105 = pneg %p28
      $region18: #{tpu_custom_call.1} parent=15 // pred_check_branch
        %107 = sbr.rel (%p105) target = $region20
      $region19: #{tpu_custom_call.1} parent=15 // pred_region
        %p108 = scmp.lt.s32.totalorder %s8, 2
        %s109 = scalar_select %p108, %s8, 2
        %s110 = smul.addr %s109, 8
        %s111 = scalar_lea.vmem %s0, %s110
      $region20: #{tpu_custom_call.1} parent=15 // pred_fallthru
        _
      // Predicated region
      $region21: #{tpu_custom_call.1} parent=15 // pred_check
        %p112 = pneg %p54
      $region22: #{tpu_custom_call.1} parent=15 // pred_check_branch
        %114 = sbr.rel (%p112) target = $region24
      $region23: #{tpu_custom_call.1} parent=15 // pred_region
        %p115 = scmp.lt.s32.totalorder %s8, 2
        %s116 = scalar_select %p115, %s8, 2
        %s117 = smul.addr %s116, 8
        %s118 = scalar_lea.vmem %s1, %s117
      $region24: #{tpu_custom_call.1} parent=15 // pred_fallthru
        _
    $region16: #{tpu_custom_call.1} parent=5 // pred_fallthru
      _
    %p119 = scmp.le.s32.totalorder 1, %s8
    %p120 = scmp.lt.s32.totalorder %s8, 4
    %p121 = pnand %p119, %p120
    %p122 = pneg %p121
    // Predicated region
    $region25: #{tpu_custom_call.1} parent=5 // pred_check
      _
    $region26: #{tpu_custom_call.1} parent=5 // pred_check_branch
      %124 = sbr.rel (%p121) target = $region28
    $region27: #{tpu_custom_call.1} parent=5 // pred_region
      %s125 = ssub.s32 %s8, 1
      %p126 = scmp.lt.s32.totalorder %s13, 2
      %s127 = scalar_select %p126, %s13, 2
      %s128 = smul.addr %s127, 8
      %s129 = scalar_lea.vmem %s0, %s128
      %p130 = pneg %p34
      %p131 = pneg %p31
      %p132 = scmp.lt.s32.totalorder %s13, 2
      %s133 = scalar_select %p132, %s13, 2
      %s134 = smul.addr %s133, 8
      %s135 = scalar_lea.vmem %s1, %s134
      %p136 = pneg %p60
      %p137 = pneg %p57
      %p138 = pneg %p86
      %p139 = pneg %p83
      %p140 = scmp.lt.s32.totalorder %s13, 2
      %s141 = scalar_select %p140, %s13, 2
      %s142 = smul.addr %s141, 8
      %s143 = scalar_lea.vmem %s2, %s142
      %p144 = scmp.lt.s32.totalorder %s13, 2
      %s145 = scalar_select %p144, %s13, 2
      %s146 = smul.addr %s145, 8
      %s147 = scalar_lea.vmem %s0, %s146
      %p148 = scmp.lt.s32.totalorder %s13, 2
      %s149 = scalar_select %p148, %s13, 2
      %s150 = smul.addr %s149, 8
      %s151 = scalar_lea.vmem %s1, %s150
      %p152 = scmp.lt.s32.totalorder %s13, 2
      %s153 = scalar_select %p152, %s13, 2
      %s154 = smul.addr %s153, 8
      %s155 = scalar_lea.vmem %s2, %s154
      %v156 = vld [vmem:[%s147] sm:$0xff]
      %v157 = vld [vmem:[%s151] sm:$0xff]
      %vm158 = vcmask 261120
      %v159 = vsel %vm158, %v156, -inf
      %160 = vmax.xlane.f32.xlu0 %v159
      %v161 = vpop.xlane.xlu0 %160
      %v162 = vsub.f32 %v156, %v161
      %v163 = vmul.f32 %v162, 1.442695
      %v164 = vpow.pop %v163
      %v165 = vsel %vm158, %v164, 0.0
      %166 = vadd.xlane.f32.xlu0 %v165
      %v167 = vpop.xlane.xlu0 %166
      %v168 = vlaneseq
      %v169 = vand.u32 %v168, 127
      %170 = vset.pattern.permute.xlu0 0
      %171 = vperm.xlu0 %170, %v157
      %v172 = vpop.permute.xlu0 %171
      %vm173 = vcmp.eq.s32.totalorder %v169, %v172
      %v174 = vsel %vm173, %v156, 0.0
      %v175 = vsel %vm158, %v174, 0.0
      %176 = vadd.xlane.f32.xlu0 %v175
      %v177 = vpop.xlane.xlu0 %176
      %v178 = vsub.f32 %v161, %v177
      %v179 = vlog2.pop %v167
      %v180 = vmul.f32 %v179, 0.6931472
      %v181 = vadd.f32 %v178, %v180
      %vm182 = vcmask 7168
      %183 = vst.msk [vmem:[%s155] sm:$0xff] %vm182, %v181
      %p184 = scmp.lt.s32.totalorder %s13, 2
      %s185 = scalar_select %p184, %s13, 2
      %s186 = smul.addr %s185, 8
      %s187 = scalar_lea.vmem %s2, %s186
      // Predicated region
      $region29: #{tpu_custom_call.1} parent=27 // pred_check
        %p188 = pneg %p83
      $region30: #{tpu_custom_call.1} parent=27 // pred_check_branch
        %190 = sbr.rel (%p188) target = $region32
      $region31: #{tpu_custom_call.1} parent=27 // pred_region
        _
      $region32: #{tpu_custom_call.1} parent=27 // pred_fallthru
        _
    $region28: #{tpu_custom_call.1} parent=5 // pred_fallthru
      _
    %p191 = scmp.le.s32.totalorder 2, %s8
    // Predicated region
    $region33: #{tpu_custom_call.1} parent=5 // pred_check
      %p192 = pneg %p191
    $region34: #{tpu_custom_call.1} parent=5 // pred_check_branch
      %194 = sbr.rel (%p192) target = $region36
    $region35: #{tpu_custom_call.1} parent=5 // pred_region
      %s195 = ssub.s32 %s8, 2
      // Predicated region
      $region37: #{tpu_custom_call.1} parent=35 // pred_check
        %p196 = pneg %p89
      $region38: #{tpu_custom_call.1} parent=35 // pred_check_branch
        %198 = sbr.rel (%p196) target = $region40
      $region39: #{tpu_custom_call.1} parent=35 // pred_region
        %p199 = scmp.lt.s32.totalorder %s14, 2
        %s200 = scalar_select %p199, %s14, 2
        %s201 = smul.addr %s200, 8
        %s202 = scalar_lea.vmem %s2, %s201
      $region40: #{tpu_custom_call.1} parent=35 // pred_fallthru
        _
    $region36: #{tpu_custom_call.1} parent=5 // pred_fallthru
      _
  $region6: #{tpu_custom_call.1} parent=0 // loop_footer
    %s12 = sadd.s32 1, %s8
  $region7: #{tpu_custom_call.1} parent=0 // loop_footer_branch
    %7 = sbr.rel target = $region3
  $region8: #{tpu_custom_call.1} parent=0 // loop_exit
    _

</llo_original>
